<compile_context>
chip_gen: v6e
topology: v6e:2x2x1
jax: 0.10.0
libtpu: 0.0.40
codegen_flags: <defaults>
</compile_context>

<pallas_src>
import functools

import jax
import jax.numpy as jnp
from jax import lax
from jax.experimental import pallas as pl
from jax.experimental.pallas import tpu as pltpu

NEG_SLOPE = 0.1             # nn.LeakyReLU(0.1)
GN_EPS = 1e-5               # nn.GroupNorm default eps
ACT_DTYPE = jnp.bfloat16    # inter-layer activation dtype (MXU native, halves HBM)


def _tpu_vmem_capacity_bytes():
    try:
        return int(pltpu.get_tpu_info().vmem_capacity_bytes)
    except Exception:
        return 64 * 1024 * 1024      # conservative default: v7x per-TC VMEM


_VMEM_CAP = _tpu_vmem_capacity_bytes()
# Exploit the 128 MiB VMEM on v5e/v6e; stay bounded (48 MiB) on v7x.
_VMEM_LIMIT = min(100 * 1024 * 1024, _VMEM_CAP * 3 // 4)
_MAX_ROW_TILE = 2048 if _VMEM_CAP >= 96 * 1024 * 1024 else 512


def _round_up(v, m):
    return (v + m - 1) // m * m


def _lane_fold(cout, rows=None):
    """Fold factor f so the stored block is (rows/f, f*cout) with f*cout as
    close to 128 lanes as possible (lane-dense stores instead of vst.msk)."""
    if cout >= 128:
        return 1
    f = 1
    while 2 * f * cout <= 128 and (rows is None or rows % (2 * f) == 0):
        f *= 2
    return f


# ----------------------------------------------------------------------------
# Pallas kernels
# ----------------------------------------------------------------------------
def _conv_tap_kernel(*args, stride, kw, wo, fold, apply_act):
    """Streamed-tap conv.  grid = (N, H_out, kh), kh is the reduction axis.

    Each step sees one padded input row per W-phase, the VMEM-resident
    (kh*kw, C, C_out) weight, the bias, the output row block and an f32 VMEM
    accumulator.  Bias + LeakyReLU (+ lane-dense fold) run in the last-tap
    epilogue only."""
    x_refs = args[:stride]
    w_ref, b_ref, o_ref, acc_ref = args[stride:]
    ki = pl.program_id(2)

    @pl.when(ki == 0)
    def _():
        acc_ref[...] = jnp.zeros_like(acc_ref)

    rows = [x_refs[p][0, 0] for p in range(stride)]           # (W_phase, C) bf16
    for kj in range(kw):                                      # unrolled, kw <= 5
        off = kj // stride
        xs = rows[kj % stride][off:off + wo, :]               # (wo, C) static slice
        wk = w_ref[ki * kw + kj]                              # (C, C_out) dynamic row
        acc_ref[...] += jnp.dot(xs, wk, preferred_element_type=jnp.float32)

    @pl.when(ki == pl.num_programs(2) - 1)
    def _():
        y = acc_ref[...] + b_ref[...]
        if apply_act:
            y = jnp.where(y >= 0, y, y * NEG_SLOPE)
        if fold > 1:
            # sublane->lane fold (XLU, idle in an MXU kernel) -> lane-dense store
            y = y.reshape(wo // fold, fold * y.shape[-1])
        o_ref[0, 0] = y.astype(o_ref.dtype)


def _matmul_bias_act_kernel(x_ref, w_ref, b_ref, o_ref, *, fold, apply_act):
    """1x1 conv: (tm, C) @ (C, C_out) single full-K matmul (K <= 512 here, so
    no K tiling, no accumulator scratch), bias + LeakyReLU fused."""
    y = jnp.dot(x_ref[...], w_ref[...], preferred_element_type=jnp.float32)
    y = y + b_ref[...]
    if apply_act:
        y = jnp.where(y >= 0, y, y * NEG_SLOPE)
    if fold > 1:
        tm, cout = y.shape
        y = y.reshape(tm // fold, fold * cout)
    o_ref[...] = y.astype(o_ref.dtype)


def _groupnorm_lrelu_kernel(x_ref, pool_ref, g_ref, b_ref, o_ref, *, inv_hw):
    """GroupNorm + LeakyReLU on one NHWC sample, block (1, H*W, C).

    Row-first reduction: per-channel sum and centered sum-of-squares are
    (1, C) sublane reductions; the (C, C) pool matrix (pool[c, c'] = 1/cg for
    same-group channels) then broadcasts group statistics back to channel
    positions with an O(C^2) matvec instead of two (HW, C) @ (C, C) matmuls.
    Two-pass (centered) variance avoids E[x^2]-E[x]^2 cancellation."""
    x = x_ref[0].astype(jnp.float32)                                   # (HW, C)
    pool = pool_ref[...]
    csum = jnp.sum(x, axis=0, keepdims=True)                           # (1, C)
    gmean = jnp.dot(csum, pool, preferred_element_type=jnp.float32) * inv_hw
    d = x - gmean
    dsq = jnp.sum(d * d, axis=0, keepdims=True)                        # (1, C)
    gvar = jnp.dot(dsq, pool, preferred_element_type=jnp.float32) * inv_hw
    scale = lax.rsqrt(gvar + GN_EPS) * g_ref[...]
    y = d * scale + b_ref[...]
    y = jnp.where(y >= 0, y, y * NEG_SLOPE)
    o_ref[0] = y.astype(o_ref.dtype)


# ----------------------------------------------------------------------------
# pallas_call wrappers
# ----------------------------------------------------------------------------
def conv2d_taps(x_nhwc, conv_p, stride, pad, apply_act, out_dtype):
    """Spatial conv (kh, kw > 1) with in-kernel tap streaming.  No im2col /
    patch matrix is ever materialized in HBM."""
    kh, kw = conv_p["ksize"]
    cout = conv_p["cout_pad"]
    n, h, w, c = x_nhwc.shape
    if pad > 0:
        x_nhwc = jnp.pad(x_nhwc, ((0, 0), (pad, pad), (pad, pad), (0, 0)))
    hp, wp = h + 2 * pad, w + 2 * pad
    ho = (hp - kh) // stride + 1
    wo = (wp - kw) // stride + 1
    # Split padded width into `stride` phases so every (ki, kj) tap is a
    # contiguous static slice of one resident row inside the kernel.
    if stride > 1:
        phases = [x_nhwc[:, :, p::stride, :] for p in range(stride)]
    else:
        phases = [x_nhwc]

    def run(fold):
        kernel = functools.partial(_conv_tap_kernel, stride=stride, kw=kw,
                                   wo=wo, fold=fold, apply_act=apply_act)
        idx_x = lambda nn, oh, ki: (nn, stride * oh + ki, 0, 0)
        in_specs = [pl.BlockSpec((1, 1, int(ph.shape[2]), c), idx_x)
                    for ph in phases]
        in_specs += [
            # full weight / bias blocks with constant index maps stay resident
            pl.BlockSpec((kh * kw, c, cout), lambda nn, oh, ki: (0, 0, 0)),
            pl.BlockSpec((1, cout), lambda nn, oh, ki: (0, 0)),
        ]
        return pl.pallas_call(
            kernel,
            out_shape=jax.ShapeDtypeStruct((n, ho, wo // fold, fold * cout),
                                           out_dtype),
            grid_spec=pltpu.PrefetchScalarGridSpec(
                num_scalar_prefetch=0,
                grid=(n, ho, kh),
                in_specs=in_specs,
                out_specs=pl.BlockSpec((1, 1, wo // fold, fold * cout),
                                       lambda nn, oh, ki: (nn, oh, 0, 0)),
                scratch_shapes=[pltpu.VMEM((wo, cout), jnp.float32)],
            ),
            compiler_params=pltpu.CompilerParams(
                dimension_semantics=("parallel", "parallel", "arbitrary"),
                vmem_limit_bytes=_VMEM_LIMIT,
            ),
        )(*phases, conv_p["w_taps"], conv_p["bias"])

    fold = _lane_fold(cout, wo)
    try:
        out = run(fold)
    except Exception:
        if fold == 1:
            raise
        out = run(1)       # lane-fold relayout unsupported -> dense store off
    out = out.reshape(n, ho, wo, cout)
    if cout != conv_p["cout"]:
        out = out[..., : conv_p["cout"]]
    return out


def conv2d_1x1(x_nhwc, conv_p, apply_act, out_dtype):
    n, h, w, c = x_nhwc.shape
    cout = conv_p["cout_pad"]
    m = n * h * w
    fold = _lane_fold(cout)
    align = 8 * fold
    # >= 2 parallel steps where possible (keeps both v7x TCs busy), big tiles
    # on 128 MiB parts; cdiv + zero-pad instead of a full-M fallback.
    tm = _round_up(min(_MAX_ROW_TILE, max(_round_up(m, align) // 2, align)), align)
    m_pad = _round_up(m, tm)
    x2 = x_nhwc.reshape(m, c)
    if m_pad != m:
        x2 = jnp.pad(x2, ((0, m_pad - m), (0, 0)))

    def run(fold):
        return pl.pallas_call(
            functools.partial(_matmul_bias_act_kernel, fold=fold,
                              apply_act=apply_act),
            out_shape=jax.ShapeDtypeStruct((m_pad // fold, fold * cout), out_dtype),
            grid_spec=pltpu.PrefetchScalarGridSpec(
                num_scalar_prefetch=0,
                grid=(m_pad // tm,),
                in_specs=[
                    pl.BlockSpec((tm, c), lambda i: (i, 0)),
                    pl.BlockSpec((c, cout), lambda i: (0, 0)),
                    pl.BlockSpec((1, cout), lambda i: (0, 0)),
                ],
                out_specs=pl.BlockSpec((tm // fold, fold * cout), lambda i: (i, 0)),
            ),
            compiler_params=pltpu.CompilerParams(
                dimension_semantics=("parallel",),
                vmem_limit_bytes=_VMEM_LIMIT,
            ),
        )(x2, conv_p["w_mat"], conv_p["bias"])

    try:
        out = run(fold)
    except Exception:
        if fold == 1:
            raise
        out = run(1)
    out = out.reshape(m_pad, cout)[:m]
    if cout != conv_p["cout"]:
        out = out[:, : conv_p["cout"]]
    return out.reshape(n, h, w, conv_p["cout"])


def conv2d_pallas(x_nhwc, conv_p, stride, pad, apply_act, out_dtype):
    kh, kw = conv_p["ksize"]
    if kh == 1 and kw == 1 and stride == 1 and pad == 0:
        return conv2d_1x1(x_nhwc, conv_p, apply_act, out_dtype)
    return conv2d_taps(x_nhwc, conv_p, stride, pad, apply_act, out_dtype)


def groupnorm_lrelu(x_nhwc, gn_p):
    n, h, w, c = x_nhwc.shape
    hw = h * w
    x3 = x_nhwc.reshape(n, hw, c)          # free reshape, NHWC is contiguous
    out = pl.pallas_call(
        functools.partial(_groupnorm_lrelu_kernel, inv_hw=1.0 / float(hw)),
        out_shape=jax.ShapeDtypeStruct((n, hw, c), x_nhwc.dtype),
        grid_spec=pltpu.PrefetchScalarGridSpec(
            num_scalar_prefetch=0,
            grid=(n,),
            in_specs=[
                pl.BlockSpec((1, hw, c), lambda i: (i, 0, 0)),
                pl.BlockSpec((c, c), lambda i: (0, 0)),      # pool, stays resident
                pl.BlockSpec((1, c), lambda i: (0, 0)),      # gamma
                pl.BlockSpec((1, c), lambda i: (0, 0)),      # beta
            ],
            out_specs=pl.BlockSpec((1, hw, c), lambda i: (i, 0, 0)),
        ),
        compiler_params=pltpu.CompilerParams(
            dimension_semantics=("parallel",),
            vmem_limit_bytes=_VMEM_LIMIT,
        ),
    )(x3, gn_p["pool"], gn_p["gamma"], gn_p["beta"])
    return out.reshape(n, h, w, c)


# ----------------------------------------------------------------------------
# Parameter preparation (done once at init)
# ----------------------------------------------------------------------------
def _prep_conv(w, b):
    cout, cin, kh, kw = w.shape
    # The final logit conv (cout=1) gets cout zero-padded to 128: full MXU
    # columns, lane-dense stores; the wrapper slices channel 0 back out.
    cout_pad = 128 if cout == 1 else cout
    wt = jnp.transpose(w, (2, 3, 1, 0))                       # (kh, kw, cin, cout)
    if cout_pad != cout:
        wt = jnp.concatenate(
            [wt, jnp.zeros(wt.shape[:3] + (cout_pad - cout,), wt.dtype)], axis=-1)
        b_pad = jnp.concatenate([b, jnp.zeros((cout_pad - cout,), b.dtype)])
    else:
        b_pad = b
    p = {
        "ksize": (kh, kw),
        "cout": cout,
        "cout_pad": cout_pad,
        "bias": b_pad.reshape(1, cout_pad).astype(jnp.float32),
        "w_raw": w,
        "b_raw": b,
    }
    if kh == 1 and kw == 1:
        p["w_mat"] = wt.reshape(cin, cout_pad).astype(ACT_DTYPE)
    else:
        p["w_taps"] = wt.reshape(kh * kw, cin, cout_pad).astype(ACT_DTYPE)
    return p


def _prep_gn(gamma, beta, groups):
    c = gamma.shape[0]
    cg = c // groups
    gid = jnp.arange(c) // cg
    pool = (gid[:, None] == gid[None, :]).astype(jnp.float32) / float(cg)
    return {
        "gamma": gamma.reshape(1, c).astype(jnp.float32),
        "beta": beta.reshape(1, c).astype(jnp.float32),
        "pool": pool,
        "gamma_raw": gamma,
        "beta_raw": beta,
    }


def init_params(key, dims, channels=3, groups=16, init_kernel_size=5):
    keys = iter(jax.random.split(key, 64))

    def conv_init(cout, cin, k):
        scale = 1.0 / (cin * k * k) ** 0.5
        w = jax.random.uniform(next(keys), (cout, cin, k, k), jnp.float32, -scale, scale)
        b = jax.random.uniform(next(keys), (cout,), jnp.float32, -scale, scale)
        return w, b

    params = {"layer0": _prep_conv(*conv_init(dims[0], channels, init_kernel_size)),
              "down": []}
    for din, dout in zip(dims[:-1], dims[1:]):
        w, b = conv_init(dout, din, 4)
        gamma = jnp.ones((dout,), jnp.float32) + 0.1 * jax.random.normal(next(keys), (dout,))
        beta = 0.1 * jax.random.normal(next(keys), (dout,))
        params["down"].append((_prep_conv(w, b), _prep_gn(gamma, beta, groups)))
    dim = dims[-1]
    params["logits1"] = _prep_conv(*conv_init(dim, dim, 1))
    params["logits2"] = _prep_conv(*conv_init(1, dim, 4))
    return params


# ----------------------------------------------------------------------------
# Forward pass
# ----------------------------------------------------------------------------
def discriminator_forward(params, x_nchw):
    x = jnp.transpose(x_nchw, (0, 2, 3, 1)).astype(ACT_DTYPE)   # NCHW -> NHWC bf16
    p0 = params["layer0"]
    x = conv2d_pallas(x, p0, stride=1, pad=p0["ksize"][0] // 2,
                      apply_act=True, out_dtype=ACT_DTYPE)
    for conv_p, gn_p in params["down"]:
        x = conv2d_pallas(x, conv_p, stride=2, pad=1, apply_act=False,
                          out_dtype=ACT_DTYPE)
        x = groupnorm_lrelu(x, gn_p)
    x = conv2d_pallas(x, params["logits1"], stride=1, pad=0,
                      apply_act=True, out_dtype=ACT_DTYPE)
    x = conv2d_pallas(x, params["logits2"], stride=1, pad=0,
                      apply_act=False, out_dtype=jnp.float32)
    return jnp.transpose(x, (0, 3, 1, 2))                       # NHWC -> NCHW


# ----------------------------------------------------------------------------
# Pure-JAX reference (f32, matches the PyTorch module semantics)
# ----------------------------------------------------------------------------
def _lrelu(x):
    return jnp.where(x >= 0, x, x * NEG_SLOPE)


def _conv_ref(x, w, b, stride, pad):
    out = lax.conv_general_dilated(x, w, (stride, stride), [(pad, pad), (pad, pad)],
                                   dimension_numbers=("NCHW", "OIHW", "NCHW"))
    return out + b[None, :, None, None]


def _gn_ref(x, gamma, beta, groups):
    n, c, h, w = x.shape
    xr = x.reshape(n, groups, -1)
    mean = xr.mean(axis=-1, keepdims=True)
    var = xr.var(axis=-1, keepdims=True)
    xr = (xr - mean) / jnp.sqrt(var + GN_EPS)
    x = xr.reshape(n, c, h, w)
    return x * gamma[None, :, None, None] + beta[None, :, None, None]


def discriminator_ref(params, x, groups):
    p0 = params["layer0"]
    x = _lrelu(_conv_ref(x, p0["w_raw"], p0["b_raw"], 1, p0["ksize"][0] // 2))
    for conv_p, gn_p in params["down"]:
        x = _conv_ref(x, conv_p["w_raw"], conv_p["b_raw"], 2, 1)
        x = _lrelu(_gn_ref(x, gn_p["gamma_raw"], gn_p["beta_raw"], groups))
    p1 = params["logits1"]
    x = _lrelu(_conv_ref(x, p1["w_raw"], p1["b_raw"], 1, 0))
    p2 = params["logits2"]
    return _conv_ref(x, p2["w_raw"], p2["b_raw"], 1, 0)


# ----------------------------------------------------------------------------
if __name__ == "__main__":
    dims = (32, 32)
    channels = 3
    groups = 16
    batch, spatial = 2, 16

    key = jax.random.PRNGKey(0)
    k_params, k_x = jax.random.split(key)
    params = init_params(k_params, dims, channels=channels, groups=groups,
                         init_kernel_size=5)
    x = jax.random.normal(k_x, (batch, channels, spatial, spatial), jnp.float32)

    out = jax.block_until_ready(discriminator_forward(params, x))
    ref = jax.block_until_ready(discriminator_ref(params, x, groups))

    assert out.shape == ref.shape == (batch, 1, 5, 5), out.shape
    max_err = float(jnp.max(jnp.abs(out - ref)))
    # bf16 operands / activations (f32 accumulation + epilogue) -> relaxed tol.
    assert jnp.allclose(out, ref, atol=8e-2, rtol=8e-2), max_err

    print("KERNEL_OK")
</pallas_src>

<mosaic_0001>
module attributes {stable_mosaic.version = 11 : i64} {
  func.func @_conv_tap_kernel(%arg0: i32, %arg1: i32, %arg2: i32, %arg3: memref<1x1x20x3xbf16, #tpu.memory_space<vmem>>, %arg4: memref<25x3x32xbf16, #tpu.memory_space<vmem>>, %arg5: memref<1x32xf32, #tpu.memory_space<vmem>>, %arg6: memref<1x1x4x128xbf16, #tpu.memory_space<vmem>>, %arg7: memref<16x32xf32, #tpu.memory_space<vmem>>) attributes {dimension_semantics = [#tpu.dimension_semantics<parallel>, #tpu.dimension_semantics<parallel>, #tpu.dimension_semantics<arbitrary>], iteration_bounds = array<i64: 2, 16, 5>, scalar_prefetch = 0 : i64, scratch_operands = 1 : i64, tpu.core_type = #tpu.core_type<tc>, window_params = [{transform_indices = @transform_0, window_bounds = array<i64: 1, 1, 20, 3>}, {pipeline_mode = #tpu.pipeline_mode<synchronous>, transform_indices = @transform_1, window_bounds = array<i64: 25, 3, 32>}, {pipeline_mode = #tpu.pipeline_mode<synchronous>, transform_indices = @transform_2, window_bounds = array<i64: 1, 32>}, {transform_indices = @transform_3, window_bounds = array<i64: 1, 1, 4, 128>}]} {
    %c0_i32 = arith.constant 0 : i32
    %0 = arith.cmpi eq, %arg2, %c0_i32 : i32
    %1 = arith.extui %0 : i1 to i32
    %c0_i32_0 = arith.constant 0 : i32
    %2 = arith.cmpi ne, %1, %c0_i32_0 : i32
    scf.if %2 {
      %cst_45 = arith.constant 0.000000e+00 : f32
      %58 = vector.broadcast %cst_45 : f32 to vector<16x32xf32>
      %c0_46 = arith.constant 0 : index
      %c0_47 = arith.constant 0 : index
      %59 = vector.load %arg7[%c0_46, %c0_47] : memref<16x32xf32, #tpu.memory_space<vmem>>, vector<16x32xf32>
      tpu.vector_store %arg7[%c0_46, %c0_47], %58 {strides = array<i32>} : memref<16x32xf32, #tpu.memory_space<vmem>>, vector<16x32xf32>,
    } else {
    }
    %c0 = arith.constant 0 : index
    %c0_1 = arith.constant 0 : index
    %c0_2 = arith.constant 0 : index
    %c0_3 = arith.constant 0 : index
    %3 = vector.load %arg3[%c0, %c0_1, %c0_2, %c0_3] : memref<1x1x20x3xbf16, #tpu.memory_space<vmem>>, vector<1x1x20x3xbf16>
    %4 = vector.shape_cast %3 : vector<1x1x20x3xbf16> to vector<20x3xbf16>
    %5 = vector.extract_strided_slice %4 {offsets = [0, 0], sizes = [16, 3], strides = [1, 1]} : vector<20x3xbf16> to vector<16x3xbf16>
    %c5_i32 = arith.constant 5 : i32
    %6 = arith.muli %arg2, %c5_i32 : i32
    %c0_i32_4 = arith.constant 0 : i32
    %7 = arith.addi %6, %c0_i32_4 : i32
    %8 = arith.index_cast %7 : i32 to index
    %c0_5 = arith.constant 0 : index
    %c0_6 = arith.constant 0 : index
    %9 = vector.load %arg4[%8, %c0_5, %c0_6] : memref<25x3x32xbf16, #tpu.memory_space<vmem>>, vector<1x3x32xbf16>
    %10 = vector.shape_cast %9 : vector<1x3x32xbf16> to vector<3x32xbf16>
    %c0_7 = arith.constant 0 : index
    %c0_8 = arith.constant 0 : index
    %11 = vector.load %arg7[%c0_7, %c0_8] : memref<16x32xf32, #tpu.memory_space<vmem>>, vector<16x32xf32>
    %cst = arith.constant dense<0.000000e+00> : vector<16x32xf32>
    %12 = tpu.matmul %5, %10, %cst {dimension_numbers = #tpu.dot_dimension_numbers<[1], [0], [0], [1], [0, 0, 1, 1], [], []>} : vector<16x3xbf16>, vector<3x32xbf16>, vector<16x32xf32> -> vector<16x32xf32>
    %13 = arith.addf %11, %12 : vector<16x32xf32>
    %c0_9 = arith.constant 0 : index
    %c0_10 = arith.constant 0 : index
    %14 = vector.load %arg7[%c0_9, %c0_10] : memref<16x32xf32, #tpu.memory_space<vmem>>, vector<16x32xf32>
    tpu.vector_store %arg7[%c0_9, %c0_10], %13 {strides = array<i32>} : memref<16x32xf32, #tpu.memory_space<vmem>>, vector<16x32xf32>,
    %15 = vector.extract_strided_slice %4 {offsets = [1, 0], sizes = [16, 3], strides = [1, 1]} : vector<20x3xbf16> to vector<16x3xbf16>
    %c5_i32_11 = arith.constant 5 : i32
    %16 = arith.muli %arg2, %c5_i32_11 : i32
    %c1_i32 = arith.constant 1 : i32
    %17 = arith.addi %16, %c1_i32 : i32
    %18 = arith.index_cast %17 : i32 to index
    %c0_12 = arith.constant 0 : index
    %c0_13 = arith.constant 0 : index
    %19 = vector.load %arg4[%18, %c0_12, %c0_13] : memref<25x3x32xbf16, #tpu.memory_space<vmem>>, vector<1x3x32xbf16>
    %20 = vector.shape_cast %19 : vector<1x3x32xbf16> to vector<3x32xbf16>
    %c0_14 = arith.constant 0 : index
    %c0_15 = arith.constant 0 : index
    %21 = vector.load %arg7[%c0_14, %c0_15] : memref<16x32xf32, #tpu.memory_space<vmem>>, vector<16x32xf32>
    %cst_16 = arith.constant dense<0.000000e+00> : vector<16x32xf32>
    %22 = tpu.matmul %15, %20, %cst_16 {dimension_numbers = #tpu.dot_dimension_numbers<[1], [0], [0], [1], [0, 0, 1, 1], [], []>} : vector<16x3xbf16>, vector<3x32xbf16>, vector<16x32xf32> -> vector<16x32xf32>
    %23 = arith.addf %21, %22 : vector<16x32xf32>
    %c0_17 = arith.constant 0 : index
    %c0_18 = arith.constant 0 : index
    %24 = vector.load %arg7[%c0_17, %c0_18] : memref<16x32xf32, #tpu.memory_space<vmem>>, vector<16x32xf32>
    tpu.vector_store %arg7[%c0_17, %c0_18], %23 {strides = array<i32>} : memref<16x32xf32, #tpu.memory_space<vmem>>, vector<16x32xf32>,
    %25 = vector.extract_strided_slice %4 {offsets = [2, 0], sizes = [16, 3], strides = [1, 1]} : vector<20x3xbf16> to vector<16x3xbf16>
    %c5_i32_19 = arith.constant 5 : i32
    %26 = arith.muli %arg2, %c5_i32_19 : i32
    %c2_i32 = arith.constant 2 : i32
    %27 = arith.addi %26, %c2_i32 : i32
    %28 = arith.index_cast %27 : i32 to index
    %c0_20 = arith.constant 0 : index
    %c0_21 = arith.constant 0 : index
    %29 = vector.load %arg4[%28, %c0_20, %c0_21] : memref<25x3x32xbf16, #tpu.memory_space<vmem>>, vector<1x3x32xbf16>
    %30 = vector.shape_cast %29 : vector<1x3x32xbf16> to vector<3x32xbf16>
    %c0_22 = arith.constant 0 : index
    %c0_23 = arith.constant 0 : index
    %31 = vector.load %arg7[%c0_22, %c0_23] : memref<16x32xf32, #tpu.memory_space<vmem>>, vector<16x32xf32>
    %cst_24 = arith.constant dense<0.000000e+00> : vector<16x32xf32>
    %32 = tpu.matmul %25, %30, %cst_24 {dimension_numbers = #tpu.dot_dimension_numbers<[1], [0], [0], [1], [0, 0, 1, 1], [], []>} : vector<16x3xbf16>, vector<3x32xbf16>, vector<16x32xf32> -> vector<16x32xf32>
    %33 = arith.addf %31, %32 : vector<16x32xf32>
    %c0_25 = arith.constant 0 : index
    %c0_26 = arith.constant 0 : index
    %34 = vector.load %arg7[%c0_25, %c0_26] : memref<16x32xf32, #tpu.memory_space<vmem>>, vector<16x32xf32>
    tpu.vector_store %arg7[%c0_25, %c0_26], %33 {strides = array<i32>} : memref<16x32xf32, #tpu.memory_space<vmem>>, vector<16x32xf32>,
    %35 = vector.extract_strided_slice %4 {offsets = [3, 0], sizes = [16, 3], strides = [1, 1]} : vector<20x3xbf16> to vector<16x3xbf16>
    %c5_i32_27 = arith.constant 5 : i32
    %36 = arith.muli %arg2, %c5_i32_27 : i32
    %c3_i32 = arith.constant 3 : i32
    %37 = arith.addi %36, %c3_i32 : i32
    %38 = arith.index_cast %37 : i32 to index
    %c0_28 = arith.constant 0 : index
    %c0_29 = arith.constant 0 : index
    %39 = vector.load %arg4[%38, %c0_28, %c0_29] : memref<25x3x32xbf16, #tpu.memory_space<vmem>>, vector<1x3x32xbf16>
    %40 = vector.shape_cast %39 : vector<1x3x32xbf16> to vector<3x32xbf16>
    %c0_30 = arith.constant 0 : index
    %c0_31 = arith.constant 0 : index
    %41 = vector.load %arg7[%c0_30, %c0_31] : memref<16x32xf32, #tpu.memory_space<vmem>>, vector<16x32xf32>
    %cst_32 = arith.constant dense<0.000000e+00> : vector<16x32xf32>
    %42 = tpu.matmul %35, %40, %cst_32 {dimension_numbers = #tpu.dot_dimension_numbers<[1], [0], [0], [1], [0, 0, 1, 1], [], []>} : vector<16x3xbf16>, vector<3x32xbf16>, vector<16x32xf32> -> vector<16x32xf32>
    %43 = arith.addf %41, %42 : vector<16x32xf32>
    %c0_33 = arith.constant 0 : index
    %c0_34 = arith.constant 0 : index
    %44 = vector.load %arg7[%c0_33, %c0_34] : memref<16x32xf32, #tpu.memory_space<vmem>>, vector<16x32xf32>
    tpu.vector_store %arg7[%c0_33, %c0_34], %43 {strides = array<i32>} : memref<16x32xf32, #tpu.memory_space<vmem>>, vector<16x32xf32>,
    %45 = vector.extract_strided_slice %4 {offsets = [4, 0], sizes = [16, 3], strides = [1, 1]} : vector<20x3xbf16> to vector<16x3xbf16>
    %c5_i32_35 = arith.constant 5 : i32
    %46 = arith.muli %arg2, %c5_i32_35 : i32
    %c4_i32 = arith.constant 4 : i32
    %47 = arith.addi %46, %c4_i32 : i32
    %48 = arith.index_cast %47 : i32 to index
    %c0_36 = arith.constant 0 : index
    %c0_37 = arith.constant 0 : index
    %49 = vector.load %arg4[%48, %c0_36, %c0_37] : memref<25x3x32xbf16, #tpu.memory_space<vmem>>, vector<1x3x32xbf16>
    %50 = vector.shape_cast %49 : vector<1x3x32xbf16> to vector<3x32xbf16>
    %c0_38 = arith.constant 0 : index
    %c0_39 = arith.constant 0 : index
    %51 = vector.load %arg7[%c0_38, %c0_39] : memref<16x32xf32, #tpu.memory_space<vmem>>, vector<16x32xf32>
    %cst_40 = arith.constant dense<0.000000e+00> : vector<16x32xf32>
    %52 = tpu.matmul %45, %50, %cst_40 {dimension_numbers = #tpu.dot_dimension_numbers<[1], [0], [0], [1], [0, 0, 1, 1], [], []>} : vector<16x3xbf16>, vector<3x32xbf16>, vector<16x32xf32> -> vector<16x32xf32>
    %53 = arith.addf %51, %52 : vector<16x32xf32>
    %c0_41 = arith.constant 0 : index
    %c0_42 = arith.constant 0 : index
    %54 = vector.load %arg7[%c0_41, %c0_42] : memref<16x32xf32, #tpu.memory_space<vmem>>, vector<16x32xf32>
    tpu.vector_store %arg7[%c0_41, %c0_42], %53 {strides = array<i32>} : memref<16x32xf32, #tpu.memory_space<vmem>>, vector<16x32xf32>,
    %c4_i32_43 = arith.constant 4 : i32
    %55 = arith.cmpi eq, %arg2, %c4_i32_43 : i32
    %56 = arith.extui %55 : i1 to i32
    %c0_i32_44 = arith.constant 0 : i32
    %57 = arith.cmpi ne, %56, %c0_i32_44 : i32
    scf.if %57 {
      %c0_45 = arith.constant 0 : index
      %c0_46 = arith.constant 0 : index
      %58 = vector.load %arg7[%c0_45, %c0_46] : memref<16x32xf32, #tpu.memory_space<vmem>>, vector<16x32xf32>
      %c0_47 = arith.constant 0 : index
      %c0_48 = arith.constant 0 : index
      %59 = vector.load %arg5[%c0_47, %c0_48] : memref<1x32xf32, #tpu.memory_space<vmem>>, vector<1x32xf32>
      %60 = vector.broadcast %59 : vector<1x32xf32> to vector<16x32xf32>
      %61 = arith.addf %58, %60 : vector<16x32xf32>
      %cst_49 = arith.constant 0.000000e+00 : f32
      %62 = vector.broadcast %cst_49 : f32 to vector<16x32xf32>
      %63 = arith.cmpf oge, %61, %62 : vector<16x32xf32>
      %cst_50 = arith.constant 1.000000e-01 : f32
      %64 = vector.broadcast %cst_50 : f32 to vector<16x32xf32>
      %65 = arith.mulf %61, %64 : vector<16x32xf32>
      %66 = arith.select %63, %61, %65 : vector<16x32xi1>, vector<16x32xf32>
      %67 = vector.shape_cast %66 : vector<16x32xf32> to vector<4x128xf32>
      %68 = arith.truncf %67 : vector<4x128xf32> to vector<4x128xbf16>
      %c0_51 = arith.constant 0 : index
      %c0_52 = arith.constant 0 : index
      %c0_53 = arith.constant 0 : index
      %c0_54 = arith.constant 0 : index
      %69 = vector.load %arg6[%c0_51, %c0_52, %c0_53, %c0_54] : memref<1x1x4x128xbf16, #tpu.memory_space<vmem>>, vector<1x1x4x128xbf16>
      %70 = vector.shape_cast %69 : vector<1x1x4x128xbf16> to vector<4x128xbf16>
      %71 = vector.shape_cast %68 : vector<4x128xbf16> to vector<1x1x4x128xbf16>
      tpu.vector_store %arg6[%c0_51, %c0_52, %c0_53, %c0_54], %71 {strides = array<i32>} : memref<1x1x4x128xbf16, #tpu.memory_space<vmem>>, vector<1x1x4x128xbf16>,
    } else {
    }
    return
  }
  func.func @transform_0(%arg0: i32, %arg1: i32, %arg2: i32) -> (i32, i32, i32, i32) {
    %c1_i32 = arith.constant 1 : i32
    %0 = arith.muli %c1_i32, %arg1 : i32
    %1 = arith.addi %0, %arg2 : i32
    %c0_i32 = arith.constant 0 : i32
    %c0_i32_0 = arith.constant 0 : i32
    %c0_i32_1 = arith.constant 0 : i32
    return %arg0, %1, %c0_i32, %c0_i32_0 : i32, i32, i32, i32
  }
  func.func @transform_1(%arg0: i32, %arg1: i32, %arg2: i32) -> (i32, i32, i32) {
    %c0_i32 = arith.constant 0 : i32
    %c0_i32_0 = arith.constant 0 : i32
    %c0_i32_1 = arith.constant 0 : i32
    %c0_i32_2 = arith.constant 0 : i32
    return %c0_i32, %c0_i32_0, %c0_i32_1 : i32, i32, i32
  }
  func.func @transform_2(%arg0: i32, %arg1: i32, %arg2: i32) -> (i32, i32) {
    %c0_i32 = arith.constant 0 : i32
    %c0_i32_0 = arith.constant 0 : i32
    %c0_i32_1 = arith.constant 0 : i32
    return %c0_i32, %c0_i32_0 : i32, i32
  }
  func.func @transform_3(%arg0: i32, %arg1: i32, %arg2: i32) -> (i32, i32, i32, i32) {
    %c0_i32 = arith.constant 0 : i32
    %c0_i32_0 = arith.constant 0 : i32
    %c0_i32_1 = arith.constant 0 : i32
    return %arg0, %arg1, %c0_i32, %c0_i32_0 : i32, i32, i32, i32
  }
}

module attributes {stable_mosaic.version = 11 : i64} {
  func.func @_conv_tap_kernel(%arg0: i32, %arg1: i32, %arg2: i32, %arg3: memref<1x1x20x3xbf16, #tpu.memory_space<vmem>>, %arg4: memref<25x3x32xbf16, #tpu.memory_space<vmem>>, %arg5: memref<1x32xf32, #tpu.memory_space<vmem>>, %arg6: memref<1x1x16x32xbf16, #tpu.memory_space<vmem>>, %arg7: memref<16x32xf32, #tpu.memory_space<vmem>>) attributes {dimension_semantics = [#tpu.dimension_semantics<parallel>, #tpu.dimension_semantics<parallel>, #tpu.dimension_semantics<arbitrary>], iteration_bounds = array<i64: 2, 16, 5>, scalar_prefetch = 0 : i64, scratch_operands = 1 : i64, tpu.core_type = #tpu.core_type<tc>, window_params = [{transform_indices = @transform_0, window_bounds = array<i64: 1, 1, 20, 3>}, {pipeline_mode = #tpu.pipeline_mode<synchronous>, transform_indices = @transform_1, window_bounds = array<i64: 25, 3, 32>}, {pipeline_mode = #tpu.pipeline_mode<synchronous>, transform_indices = @transform_2, window_bounds = array<i64: 1, 32>}, {transform_indices = @transform_3, window_bounds = array<i64: 1, 1, 16, 32>}]} {
    %c0_i32 = arith.constant 0 : i32
    %0 = arith.cmpi eq, %arg2, %c0_i32 : i32
    %1 = arith.extui %0 : i1 to i32
    %c0_i32_0 = arith.constant 0 : i32
    %2 = arith.cmpi ne, %1, %c0_i32_0 : i32
    scf.if %2 {
      %cst_45 = arith.constant 0.000000e+00 : f32
      %58 = vector.broadcast %cst_45 : f32 to vector<16x32xf32>
      %c0_46 = arith.constant 0 : index
      %c0_47 = arith.constant 0 : index
      %59 = vector.load %arg7[%c0_46, %c0_47] : memref<16x32xf32, #tpu.memory_space<vmem>>, vector<16x32xf32>
      tpu.vector_store %arg7[%c0_46, %c0_47], %58 {strides = array<i32>} : memref<16x32xf32, #tpu.memory_space<vmem>>, vector<16x32xf32>,
    } else {
    }
    %c0 = arith.constant 0 : index
    %c0_1 = arith.constant 0 : index
    %c0_2 = arith.constant 0 : index
    %c0_3 = arith.constant 0 : index
    %3 = vector.load %arg3[%c0, %c0_1, %c0_2, %c0_3] : memref<1x1x20x3xbf16, #tpu.memory_space<vmem>>, vector<1x1x20x3xbf16>
    %4 = vector.shape_cast %3 : vector<1x1x20x3xbf16> to vector<20x3xbf16>
    %5 = vector.extract_strided_slice %4 {offsets = [0, 0], sizes = [16, 3], strides = [1, 1]} : vector<20x3xbf16> to vector<16x3xbf16>
    %c5_i32 = arith.constant 5 : i32
    %6 = arith.muli %arg2, %c5_i32 : i32
    %c0_i32_4 = arith.constant 0 : i32
    %7 = arith.addi %6, %c0_i32_4 : i32
    %8 = arith.index_cast %7 : i32 to index
    %c0_5 = arith.constant 0 : index
    %c0_6 = arith.constant 0 : index
    %9 = vector.load %arg4[%8, %c0_5, %c0_6] : memref<25x3x32xbf16, #tpu.memory_space<vmem>>, vector<1x3x32xbf16>
    %10 = vector.shape_cast %9 : vector<1x3x32xbf16> to vector<3x32xbf16>
    %c0_7 = arith.constant 0 : index
    %c0_8 = arith.constant 0 : index
    %11 = vector.load %arg7[%c0_7, %c0_8] : memref<16x32xf32, #tpu.memory_space<vmem>>, vector<16x32xf32>
    %cst = arith.constant dense<0.000000e+00> : vector<16x32xf32>
    %12 = tpu.matmul %5, %10, %cst {dimension_numbers = #tpu.dot_dimension_numbers<[1], [0], [0], [1], [0, 0, 1, 1], [], []>} : vector<16x3xbf16>, vector<3x32xbf16>, vector<16x32xf32> -> vector<16x32xf32>
    %13 = arith.addf %11, %12 : vector<16x32xf32>
    %c0_9 = arith.constant 0 : index
    %c0_10 = arith.constant 0 : index
    %14 = vector.load %arg7[%c0_9, %c0_10] : memref<16x32xf32, #tpu.memory_space<vmem>>, vector<16x32xf32>
    tpu.vector_store %arg7[%c0_9, %c0_10], %13 {strides = array<i32>} : memref<16x32xf32, #tpu.memory_space<vmem>>, vector<16x32xf32>,
    %15 = vector.extract_strided_slice %4 {offsets = [1, 0], sizes = [16, 3], strides = [1, 1]} : vector<20x3xbf16> to vector<16x3xbf16>
    %c5_i32_11 = arith.constant 5 : i32
    %16 = arith.muli %arg2, %c5_i32_11 : i32
    %c1_i32 = arith.constant 1 : i32
    %17 = arith.addi %16, %c1_i32 : i32
    %18 = arith.index_cast %17 : i32 to index
    %c0_12 = arith.constant 0 : index
    %c0_13 = arith.constant 0 : index
    %19 = vector.load %arg4[%18, %c0_12, %c0_13] : memref<25x3x32xbf16, #tpu.memory_space<vmem>>, vector<1x3x32xbf16>
    %20 = vector.shape_cast %19 : vector<1x3x32xbf16> to vector<3x32xbf16>
    %c0_14 = arith.constant 0 : index
    %c0_15 = arith.constant 0 : index
    %21 = vector.load %arg7[%c0_14, %c0_15] : memref<16x32xf32, #tpu.memory_space<vmem>>, vector<16x32xf32>
    %cst_16 = arith.constant dense<0.000000e+00> : vector<16x32xf32>
    %22 = tpu.matmul %15, %20, %cst_16 {dimension_numbers = #tpu.dot_dimension_numbers<[1], [0], [0], [1], [0, 0, 1, 1], [], []>} : vector<16x3xbf16>, vector<3x32xbf16>, vector<16x32xf32> -> vector<16x32xf32>
    %23 = arith.addf %21, %22 : vector<16x32xf32>
    %c0_17 = arith.constant 0 : index
    %c0_18 = arith.constant 0 : index
    %24 = vector.load %arg7[%c0_17, %c0_18] : memref<16x32xf32, #tpu.memory_space<vmem>>, vector<16x32xf32>
    tpu.vector_store %arg7[%c0_17, %c0_18], %23 {strides = array<i32>} : memref<16x32xf32, #tpu.memory_space<vmem>>, vector<16x32xf32>,
    %25 = vector.extract_strided_slice %4 {offsets = [2, 0], sizes = [16, 3], strides = [1, 1]} : vector<20x3xbf16> to vector<16x3xbf16>
    %c5_i32_19 = arith.constant 5 : i32
    %26 = arith.muli %arg2, %c5_i32_19 : i32
    %c2_i32 = arith.constant 2 : i32
    %27 = arith.addi %26, %c2_i32 : i32
    %28 = arith.index_cast %27 : i32 to index
    %c0_20 = arith.constant 0 : index
    %c0_21 = arith.constant 0 : index
    %29 = vector.load %arg4[%28, %c0_20, %c0_21] : memref<25x3x32xbf16, #tpu.memory_space<vmem>>, vector<1x3x32xbf16>
    %30 = vector.shape_cast %29 : vector<1x3x32xbf16> to vector<3x32xbf16>
    %c0_22 = arith.constant 0 : index
    %c0_23 = arith.constant 0 : index
    %31 = vector.load %arg7[%c0_22, %c0_23] : memref<16x32xf32, #tpu.memory_space<vmem>>, vector<16x32xf32>
    %cst_24 = arith.constant dense<0.000000e+00> : vector<16x32xf32>
    %32 = tpu.matmul %25, %30, %cst_24 {dimension_numbers = #tpu.dot_dimension_numbers<[1], [0], [0], [1], [0, 0, 1, 1], [], []>} : vector<16x3xbf16>, vector<3x32xbf16>, vector<16x32xf32> -> vector<16x32xf32>
    %33 = arith.addf %31, %32 : vector<16x32xf32>
    %c0_25 = arith.constant 0 : index
    %c0_26 = arith.constant 0 : index
    %34 = vector.load %arg7[%c0_25, %c0_26] : memref<16x32xf32, #tpu.memory_space<vmem>>, vector<16x32xf32>
    tpu.vector_store %arg7[%c0_25, %c0_26], %33 {strides = array<i32>} : memref<16x32xf32, #tpu.memory_space<vmem>>, vector<16x32xf32>,
    %35 = vector.extract_strided_slice %4 {offsets = [3, 0], sizes = [16, 3], strides = [1, 1]} : vector<20x3xbf16> to vector<16x3xbf16>
    %c5_i32_27 = arith.constant 5 : i32
    %36 = arith.muli %arg2, %c5_i32_27 : i32
    %c3_i32 = arith.constant 3 : i32
    %37 = arith.addi %36, %c3_i32 : i32
    %38 = arith.index_cast %37 : i32 to index
    %c0_28 = arith.constant 0 : index
    %c0_29 = arith.constant 0 : index
    %39 = vector.load %arg4[%38, %c0_28, %c0_29] : memref<25x3x32xbf16, #tpu.memory_space<vmem>>, vector<1x3x32xbf16>
    %40 = vector.shape_cast %39 : vector<1x3x32xbf16> to vector<3x32xbf16>
    %c0_30 = arith.constant 0 : index
    %c0_31 = arith.constant 0 : index
    %41 = vector.load %arg7[%c0_30, %c0_31] : memref<16x32xf32, #tpu.memory_space<vmem>>, vector<16x32xf32>
    %cst_32 = arith.constant dense<0.000000e+00> : vector<16x32xf32>
    %42 = tpu.matmul %35, %40, %cst_32 {dimension_numbers = #tpu.dot_dimension_numbers<[1], [0], [0], [1], [0, 0, 1, 1], [], []>} : vector<16x3xbf16>, vector<3x32xbf16>, vector<16x32xf32> -> vector<16x32xf32>
    %43 = arith.addf %41, %42 : vector<16x32xf32>
    %c0_33 = arith.constant 0 : index
    %c0_34 = arith.constant 0 : index
    %44 = vector.load %arg7[%c0_33, %c0_34] : memref<16x32xf32, #tpu.memory_space<vmem>>, vector<16x32xf32>
    tpu.vector_store %arg7[%c0_33, %c0_34], %43 {strides = array<i32>} : memref<16x32xf32, #tpu.memory_space<vmem>>, vector<16x32xf32>,
    %45 = vector.extract_strided_slice %4 {offsets = [4, 0], sizes = [16, 3], strides = [1, 1]} : vector<20x3xbf16> to vector<16x3xbf16>
    %c5_i32_35 = arith.constant 5 : i32
    %46 = arith.muli %arg2, %c5_i32_35 : i32
    %c4_i32 = arith.constant 4 : i32
    %47 = arith.addi %46, %c4_i32 : i32
    %48 = arith.index_cast %47 : i32 to index
    %c0_36 = arith.constant 0 : index
    %c0_37 = arith.constant 0 : index
    %49 = vector.load %arg4[%48, %c0_36, %c0_37] : memref<25x3x32xbf16, #tpu.memory_space<vmem>>, vector<1x3x32xbf16>
    %50 = vector.shape_cast %49 : vector<1x3x32xbf16> to vector<3x32xbf16>
    %c0_38 = arith.constant 0 : index
    %c0_39 = arith.constant 0 : index
    %51 = vector.load %arg7[%c0_38, %c0_39] : memref<16x32xf32, #tpu.memory_space<vmem>>, vector<16x32xf32>
    %cst_40 = arith.constant dense<0.000000e+00> : vector<16x32xf32>
    %52 = tpu.matmul %45, %50, %cst_40 {dimension_numbers = #tpu.dot_dimension_numbers<[1], [0], [0], [1], [0, 0, 1, 1], [], []>} : vector<16x3xbf16>, vector<3x32xbf16>, vector<16x32xf32> -> vector<16x32xf32>
    %53 = arith.addf %51, %52 : vector<16x32xf32>
    %c0_41 = arith.constant 0 : index
    %c0_42 = arith.constant 0 : index
    %54 = vector.load %arg7[%c0_41, %c0_42] : memref<16x32xf32, #tpu.memory_space<vmem>>, vector<16x32xf32>
    tpu.vector_store %arg7[%c0_41, %c0_42], %53 {strides = array<i32>} : memref<16x32xf32, #tpu.memory_space<vmem>>, vector<16x32xf32>,
    %c4_i32_43 = arith.constant 4 : i32
    %55 = arith.cmpi eq, %arg2, %c4_i32_43 : i32
    %56 = arith.extui %55 : i1 to i32
    %c0_i32_44 = arith.constant 0 : i32
    %57 = arith.cmpi ne, %56, %c0_i32_44 : i32
    scf.if %57 {
      %c0_45 = arith.constant 0 : index
      %c0_46 = arith.constant 0 : index
      %58 = vector.load %arg7[%c0_45, %c0_46] : memref<16x32xf32, #tpu.memory_space<vmem>>, vector<16x32xf32>
      %c0_47 = arith.constant 0 : index
      %c0_48 = arith.constant 0 : index
      %59 = vector.load %arg5[%c0_47, %c0_48] : memref<1x32xf32, #tpu.memory_space<vmem>>, vector<1x32xf32>
      %60 = vector.broadcast %59 : vector<1x32xf32> to vector<16x32xf32>
      %61 = arith.addf %58, %60 : vector<16x32xf32>
      %cst_49 = arith.constant 0.000000e+00 : f32
      %62 = vector.broadcast %cst_49 : f32 to vector<16x32xf32>
      %63 = arith.cmpf oge, %61, %62 : vector<16x32xf32>
      %cst_50 = arith.constant 1.000000e-01 : f32
      %64 = vector.broadcast %cst_50 : f32 to vector<16x32xf32>
      %65 = arith.mulf %61, %64 : vector<16x32xf32>
      %66 = arith.select %63, %61, %65 : vector<16x32xi1>, vector<16x32xf32>
      %67 = arith.truncf %66 : vector<16x32xf32> to vector<16x32xbf16>
      %c0_51 = arith.constant 0 : index
      %c0_52 = arith.constant 0 : index
      %c0_53 = arith.constant 0 : index
      %c0_54 = arith.constant 0 : index
      %68 = vector.load %arg6[%c0_51, %c0_52, %c0_53, %c0_54] : memref<1x1x16x32xbf16, #tpu.memory_space<vmem>>, vector<1x1x16x32xbf16>
      %69 = vector.shape_cast %68 : vector<1x1x16x32xbf16> to vector<16x32xbf16>
      %70 = vector.shape_cast %67 : vector<16x32xbf16> to vector<1x1x16x32xbf16>
      tpu.vector_store %arg6[%c0_51, %c0_52, %c0_53, %c0_54], %70 {strides = array<i32>} : memref<1x1x16x32xbf16, #tpu.memory_space<vmem>>, vector<1x1x16x32xbf16>,
    } else {
    }
    return
  }
  func.func @transform_0(%arg0: i32, %arg1: i32, %arg2: i32) -> (i32, i32, i32, i32) {
    %c1_i32 = arith.constant 1 : i32
    %0 = arith.muli %c1_i32, %arg1 : i32
    %1 = arith.addi %0, %arg2 : i32
    %c0_i32 = arith.constant 0 : i32
    %c0_i32_0 = arith.constant 0 : i32
    %c0_i32_1 = arith.constant 0 : i32
    return %arg0, %1, %c0_i32, %c0_i32_0 : i32, i32, i32, i32
  }
  func.func @transform_1(%arg0: i32, %arg1: i32, %arg2: i32) -> (i32, i32, i32) {
    %c0_i32 = arith.constant 0 : i32
    %c0_i32_0 = arith.constant 0 : i32
    %c0_i32_1 = arith.constant 0 : i32
    %c0_i32_2 = arith.constant 0 : i32
    return %c0_i32, %c0_i32_0, %c0_i32_1 : i32, i32, i32
  }
  func.func @transform_2(%arg0: i32, %arg1: i32, %arg2: i32) -> (i32, i32) {
    %c0_i32 = arith.constant 0 : i32
    %c0_i32_0 = arith.constant 0 : i32
    %c0_i32_1 = arith.constant 0 : i32
    return %c0_i32, %c0_i32_0 : i32, i32
  }
  func.func @transform_3(%arg0: i32, %arg1: i32, %arg2: i32) -> (i32, i32, i32, i32) {
    %c0_i32 = arith.constant 0 : i32
    %c0_i32_0 = arith.constant 0 : i32
    %c0_i32_1 = arith.constant 0 : i32
    return %arg0, %arg1, %c0_i32, %c0_i32_0 : i32, i32, i32, i32
  }
}

</mosaic_0001>

<llo_original>
// kernel: tpu_custom_call.1
$region0: #{tpu_custom_call.1}
  #allocation0 [shape = 'u32[]', space=smem, size = 0x4, offset = 0x4, fixed_abs, tag = 'smem constant byte address 0x4 - core index']
  #allocation1 [shape = 'u32[144,128]{1,0:T(1,128)}', space=vmem, size = 0x12000, scoped, tag = 'internal scratch']
  #allocation2 [shape = 'f32[16,32]{1,0:T(8,128)}', space=vmem, size = 0x2000, scoped, tag = 'scratch operand']
  %s0 = inlined_call_operand.vmem [shape: bf16[2,20,20,3], index: 0, kind: input, shape index: {}]
  %s1 = inlined_call_operand.vmem [shape: bf16[25,3,32], index: 1, kind: input, shape index: {}]
  %s2 = inlined_call_operand.vmem [shape: f32[1,32], index: 2, kind: input, shape index: {}]
  %s3 = inlined_call_operand.hbm [shape: bf16[2,16,16,32], index: 3, kind: output, shape index: {}]
  %s4 = sld [smem:[#allocation0]]
  $region53: #{tpu_custom_call.1} parent=0
    _
  %s6 = ssub.s32 1, %s4
  %s7 = scalar_select 0, %s6, %s4
  $region1: #{tpu_custom_call.1} parent=0
    #allocation3 [shape = 'u8[8192]{0}', space=vmem, size = 0x2000, scoped, tag = 'output window, operand 0']
    #allocation4 [shape = 's32[2]{0}', space=sflag, size = 0x8, scoped, tag = 'scoped memory for tpu_custom_call.1']
    %8 = vsyncpa [#allocation4], 0
    %s9 = scalar_lea.sflag [#allocation4], 1
    %10 = vsyncpa %s9, 0
    loop: start=0, step=1, limit=162
    $region2: #{tpu_custom_call.1} parent=1 // loop_pre_header
      _
    $region3: #{tpu_custom_call.1} parent=1 // loop_header
      %s12 = sphi 0, %s16
      %p13 = scmp.ge.s32.totalorder %s12, 162
      %s19 = sphi 0, %s38
      %s20 = sphi 0, %s34
      %s21 = sphi 0, %s30
      %s22 = sphi 0, %s19
      %s23 = sphi 0, %s20
      %s24 = sphi 0, %s21
      %s25 = sphi 0, %s22
      %s26 = sphi 0, %s23
      %s27 = sphi 0, %s24
      %s45 = sphi 0, %s47
      %s48 = sphi 0, %s45
      %s49 = sphi 0, %s48
      %s65 = sphi 0, %s49
      %s69 = sphi 0, %s69
      %s71 = sphi 0, %s69
      %s72 = sphi 0, %s71
      %s86 = sphi 0, %s72
      %s90 = sphi 0, %s90
      %s92 = sphi 0, %s90
      %s93 = sphi 0, %s92
      %s107 = sphi 0, %s93
      %s115 = sphi 0, %s117
      %s118 = sphi 0, %s115
      %s119 = sphi 0, %s118
      %s135 = sphi 0, %s119
    $region4: #{tpu_custom_call.1} parent=1 // loop_header_branch
      %15 = sbr.rel (%p13) target = $region8
    $region5: #{tpu_custom_call.1} parent=1 // loop_body
      %s17 = ssub.s32 %s12, 1
      %s18 = ssub.s32 %s12, 2
      %s28 = sadd.s32 1, %s21
      %p29 = scmp.ge.s32.totalorder %s28, 5
      %s30 = scalar_select %p29, 0, %s28
      %s31 = sadd.s32 1, %s20
      %s32 = scalar_select %p29, %s31, %s20
      %p33 = scmp.ge.s32.totalorder %s32, 16
      %s34 = scalar_select %p33, 0, %s32
      %s35 = sadd.s32 1, %s19
      %s36 = scalar_select %p33, %s35, %s19
      %p37 = scmp.ge.s32.totalorder %s36, 2
      %s38 = scalar_select %p37, 0, %s36
      %s39 = sadd.s32 %s20, %s21
      %s40 = sadd.s32 %s34, %s30
      %s41 = ssub.s32 %s19, %s38
      %s42 = ssub.s32 %s39, %s40
      %s43 = sor.u32 %s41, %s42
      %p44 = scmp.eq.s32.totalorder %s43, 0
      %s46 = sadd.s32 %s45, 1
      %s47 = scalar_select %p44, %s45, %s46
      %p50 = pneg %p44
      %p51 = scmp.eq.s32.totalorder %s12, 159
      %p52 = por %p50, %p51
      %p53 = scmp.ne.s32.totalorder %s45, %s48
      %p54 = scmp.eq.s32.totalorder %s12, 0
      %p55 = por %p53, %p54
      %p56 = scmp.ne.s32.totalorder %s45, %s48
      %p57 = scmp.eq.s32.totalorder %s17, 159
      %p58 = por %p56, %p57
      %p59 = scmp.ne.s32.totalorder %s48, %s49
      %p60 = scmp.eq.s32.totalorder %s17, 0
      %p61 = por %p59, %p60
      %p62 = scmp.ne.s32.totalorder %s48, %s49
      %p63 = scmp.eq.s32.totalorder %s18, 159
      %p64 = por %p62, %p63
      %p66 = scmp.ne.s32.totalorder %s49, %s65
      %p67 = scmp.eq.s32.totalorder %s18, 0
      %p68 = por %p66, %p67
      %s70 = sadd.s32 %s69, 1
      %p73 = scmp.eq.s32.totalorder %s12, 159
      %p74 = scmp.ne.s32.totalorder %s69, %s71
      %p75 = scmp.eq.s32.totalorder %s12, 0
      %p76 = por %p74, %p75
      %p77 = scmp.ne.s32.totalorder %s69, %s71
      %p78 = scmp.eq.s32.totalorder %s17, 159
      %p79 = por %p77, %p78
      %p80 = scmp.ne.s32.totalorder %s71, %s72
      %p81 = scmp.eq.s32.totalorder %s17, 0
      %p82 = por %p80, %p81
      %p83 = scmp.ne.s32.totalorder %s71, %s72
      %p84 = scmp.eq.s32.totalorder %s18, 159
      %p85 = por %p83, %p84
      %p87 = scmp.ne.s32.totalorder %s72, %s86
      %p88 = scmp.eq.s32.totalorder %s18, 0
      %p89 = por %p87, %p88
      %s91 = sadd.s32 %s90, 1
      %p94 = scmp.eq.s32.totalorder %s12, 159
      %p95 = scmp.ne.s32.totalorder %s90, %s92
      %p96 = scmp.eq.s32.totalorder %s12, 0
      %p97 = por %p95, %p96
      %p98 = scmp.ne.s32.totalorder %s90, %s92
      %p99 = scmp.eq.s32.totalorder %s17, 159
      %p100 = por %p98, %p99
      %p101 = scmp.ne.s32.totalorder %s92, %s93
      %p102 = scmp.eq.s32.totalorder %s17, 0
      %p103 = por %p101, %p102
      %p104 = scmp.ne.s32.totalorder %s92, %s93
      %p105 = scmp.eq.s32.totalorder %s18, 159
      %p106 = por %p104, %p105
      %p108 = scmp.ne.s32.totalorder %s93, %s107
      %p109 = scmp.eq.s32.totalorder %s18, 0
      %p110 = por %p108, %p109
      %s111 = ssub.s32 %s19, %s38
      %s112 = ssub.s32 %s20, %s34
      %s113 = sor.u32 %s111, %s112
      %p114 = scmp.eq.s32.totalorder %s113, 0
      %s116 = sadd.s32 %s115, 1
      %s117 = scalar_select %p114, %s115, %s116
      %p120 = pneg %p114
      %p121 = scmp.eq.s32.totalorder %s12, 159
      %p122 = por %p120, %p121
      %p123 = scmp.ne.s32.totalorder %s115, %s118
      %p124 = scmp.eq.s32.totalorder %s12, 0
      %p125 = por %p123, %p124
      %p126 = scmp.ne.s32.totalorder %s115, %s118
      %p127 = scmp.eq.s32.totalorder %s17, 159
      %p128 = por %p126, %p127
      %p129 = scmp.ne.s32.totalorder %s118, %s119
      %p130 = scmp.eq.s32.totalorder %s17, 0
      %p131 = por %p129, %p130
      %p132 = scmp.ne.s32.totalorder %s118, %s119
      %p133 = scmp.eq.s32.totalorder %s18, 159
      %p134 = por %p132, %p133
      %p136 = scmp.ne.s32.totalorder %s119, %s135
      %p137 = scmp.eq.s32.totalorder %s18, 0
      %p138 = por %p136, %p137
      %p139 = scmp.le.s32.totalorder 1, %s12
      %p140 = scmp.lt.s32.totalorder %s12, 161
      %p141 = pnand %p139, %p140
      %p142 = pneg %p141
      // Predicated region
      $region9: #{tpu_custom_call.1} parent=5 // pred_check
        _
      $region10: #{tpu_custom_call.1} parent=5 // pred_check_branch
        %144 = sbr.rel (%p141) target = $region12
      $region11: #{tpu_custom_call.1} parent=5 // pred_region
        %s145 = ssub.s32 %s12, 1
        // Predicated region
        $region13: #{tpu_custom_call.1} parent=11 // pred_check
          %p146 = pneg %p82
        $region14: #{tpu_custom_call.1} parent=11 // pred_check_branch
          %148 = sbr.rel (%p146) target = $region16
        $region15: #{tpu_custom_call.1} parent=11 // pred_region
          _
        $region16: #{tpu_custom_call.1} parent=11 // pred_fallthru
          _
        // Predicated region
        $region17: #{tpu_custom_call.1} parent=11 // pred_check
          %p149 = pneg %p103
        $region18: #{tpu_custom_call.1} parent=11 // pred_check_branch
          %151 = sbr.rel (%p149) target = $region20
        $region19: #{tpu_custom_call.1} parent=11 // pred_region
          _
        $region20: #{tpu_custom_call.1} parent=11 // pred_fallthru
          _
      $region12: #{tpu_custom_call.1} parent=5 // pred_fallthru
        _
      %p152 = scmp.lt.s32.totalorder %s12, 160
      // Predicated region
      $region21: #{tpu_custom_call.1} parent=5 // pred_check
        %p153 = pneg %p152
      $region22: #{tpu_custom_call.1} parent=5 // pred_check_branch
        %155 = sbr.rel (%p153) target = $region24
      $region23: #{tpu_custom_call.1} parent=5 // pred_region
        // Predicated region
        $region25: #{tpu_custom_call.1} parent=23 // pred_check
          %p156 = pneg %p55
        $region26: #{tpu_custom_call.1} parent=23 // pred_check_branch
          %158 = sbr.rel (%p156) target = $region28
        $region27: #{tpu_custom_call.1} parent=23 // pred_region
          %s159 = sadd.s32 %s20, %s21
          %p160 = scmp.lt.s32.totalorder %s19, 1
          %s161 = scalar_select %p160, %s19, 1
          %p162 = scmp.lt.s32.totalorder %s159, 19
          %s163 = scalar_select %p162, %s159, 19
          %s164 = smul.addr %s163, 3
          %s165 = smul.addr %s161, 60
          %s166 = sadd.s32 %s164, %s165
          %s167 = smul.addr %s166, 4
          %s168 = scalar_lea.vmem %s0, %s167
          %s169 = sadd.s32 %s20, %s21
        $region28: #{tpu_custom_call.1} parent=23 // pred_fallthru
          _
      $region24: #{tpu_custom_call.1} parent=5 // pred_fallthru
        _
      %p170 = scmp.le.s32.totalorder 1, %s12
      %p171 = scmp.lt.s32.totalorder %s12, 161
      %p172 = pnand %p170, %p171
      %p173 = pneg %p172
      // Predicated region
      $region29: #{tpu_custom_call.1} parent=5 // pred_check
        _
      $region30: #{tpu_custom_call.1} parent=5 // pred_check_branch
        %175 = sbr.rel (%p172) target = $region32
      $region31: #{tpu_custom_call.1} parent=5 // pred_region
        %s176 = ssub.s32 %s12, 1
        %s177 = sadd.s32 %s23, %s24
        %p178 = scmp.lt.s32.totalorder %s22, 1
        %s179 = scalar_select %p178, %s22, 1
        %p180 = scmp.lt.s32.totalorder %s177, 19
        %s181 = scalar_select %p180, %s177, 19
        %s182 = smul.addr %s181, 3
        %s183 = smul.addr %s179, 60
        %s184 = sadd.s32 %s182, %s183
        %s185 = smul.addr %s184, 4
        %s186 = scalar_lea.vmem %s0, %s185
        %p187 = pneg %p61
        %p188 = pneg %p58
        %p189 = pneg %p82
        %p190 = pneg %p79
        %p191 = pneg %p103
        %p192 = pneg %p100
        %p193 = pneg %p131
        %p194 = pneg %p128
        %s195 = sand.u32 %s118, 1
        %s196 = scalar_lea.sflag [#allocation4], %s195
        %s197 = sand.u32 %s118, 1
        %s198 = smul.addr %s197, 8
        %s199 = scalar_lea.vmem [#allocation3], %s198
        %s200 = sadd.s32 %s23, %s24
        %p201 = scmp.lt.s32.totalorder %s22, 1
        %s202 = scalar_select %p201, %s22, 1
        %p203 = scmp.lt.s32.totalorder %s200, 19
        %s204 = scalar_select %p203, %s200, 19
        %s205 = smul.addr %s204, 3
        %s206 = smul.addr %s202, 60
        %s207 = sadd.s32 %s205, %s206
        %s208 = smul.addr %s207, 4
        %s209 = scalar_lea.vmem %s0, %s208
        %s210 = sadd.s32 %s23, %s24
        %p212 = scmp.eq.s32.totalorder %s24, 0
        // Predicated region
        $region33: #{tpu_custom_call.1} parent=31 // pred_check
          %p213 = pneg %p212
        $region34: #{tpu_custom_call.1} parent=31 // pred_check_branch
          %215 = sbr.rel (%p213) target = $region36
        $region35: #{tpu_custom_call.1} parent=31 // pred_region
          %vm216 = vcmask 261120
          %217 = vst.msk [vmem:[#allocation2] sm:$0xff] %vm216, 0.0
          %218 = vst.msk [vmem:[#allocation2 + $0x8] sm:$0xff] %vm216, 0.0
        $region36: #{tpu_custom_call.1} parent=31 // pred_fallthru
          _
        %v219 = vld [vmem:[%s209] sm:$0xf]
        %v220 = vld [vmem:[%s209 + $0x4] sm:$0xf]
        %v221 = vld [vmem:[%s209 + $0x8] sm:$0x3]
        %s222 = smul.u32 %s24, 5
        %s223 = smul.addr %s222, 2
        %s224 = scalar_lea.vmem %s1, %s223
        %v225 = vld [vmem:[%s224] sm:$0x3]
        %v226 = vld [vmem:[#allocation2] sm:$0xff]
        %v227 = vld [vmem:[#allocation2 + $0x8] sm:$0xff]
        %v230 = vunpack.c.l.b16 %v219
        %v231 = vunpack.c.l.b16 %v220
        %v232 = vpack.c.b16 %v231, %v230
        %vm233 = vcmask 23552
        %v235 = vsel %vm233, %v232, 0
        %vm237 = vcmask 1040384
        %vm238 = vcmask 1041408
        %v239 = vsel %vm237, 4294967295, 65535
        %v240 = vsel %vm238, %v239, 0
        %v242 = vand.u32 %v225, %v240
        %244 = vmatprep.subr.bf16.mxu0 0
        %245 = vmatpush1.bf16.msra.mxu0 0
        %246 = vmatprep.subr.bf16.mxu0 0
        %247 = vmatpush1.bf16.msra.mxu0 0
        %248 = vmatprep.subr.bf16.mxu0 0
        %249 = vmatpush1.bf16.msra.mxu0 0
        %250 = vmatprep.subr.bf16.mxu0 0
        %251 = vmatpush1.bf16.msra.mxu0 0
        %252 = vmatprep.subr.bf16.mxu0 0
        %253 = vmatpush1.bf16.msra.mxu0 0
        %254 = vmatprep.subr.bf16.mxu0 0
        %255 = vmatpush1.bf16.msra.mxu0 0
        %256 = vmatprep.subr.bf16.mxu0 0
        %257 = vmatpush1.bf16.msra.mxu0 0
        %258 = vmatprep.subr.bf16.mxu0 0
        %259 = vmatpush1.bf16.msra.mxu0 %v242
        %260 = vmatprep.subr.bf16.mxu0 0
        %261 = vmatpush2.bf16.msra.mxu0 0
        %262 = vmatprep.subr.bf16.mxu0 0
        %263 = vmatpush2.bf16.msra.mxu0 0
        %264 = vmatprep.subr.bf16.mxu0 0
        %265 = vmatpush2.bf16.msra.mxu0 0
        %266 = vmatprep.subr.bf16.mxu0 0
        %267 = vmatpush2.bf16.msra.mxu0 0
        %268 = vmatprep.subr.bf16.mxu0 0
        %269 = vmatpush2.bf16.msra.mxu0 0
        %270 = vmatprep.subr.bf16.mxu0 0
        %271 = vmatpush2.bf16.msra.mxu0 0
        %272 = vmatprep.subr.bf16.mxu0 0
        %273 = vmatpush2.bf16.msra.mxu0 0
        %274 = vmatprep.subr.bf16.mxu0 0
        %275 = vmatpush2.bf16.msra.mxu0 0
        %276 = vmatprep.mubr.bf16.mxu0 0
        %277 = vmatmul.mubr.bf16.gmra.mxu0 %v235
        %v278 = vpop.f32.mrf.mxu0
        %v279 = vadd.f32 0.0, %v278
        %v280 = vpop.f32.mrf.mxu0
        %v281 = vpop.f32.mrf.mxu0
        %v282 = vadd.f32 0.0, %v281
        %v283 = vpop.f32.mrf.mxu0
        %284 = vdwg.mxu0
        %v285 = vadd.f32 %v226, %v279
        %v286 = vadd.f32 %v227, %v282
        %vm287 = vcmask 261120
        %288 = vst.msk [vmem:[#allocation2] sm:$0xff] %vm287, %v285
        %289 = vst.msk [vmem:[#allocation2 + $0x8] sm:$0xff] %vm287, %v286
        %s290 = sadd.s32 %s222, 1
        %s291 = smul.addr %s290, 2
        %s292 = scalar_lea.vmem %s1, %s291
        %v293 = vld [vmem:[%s292] sm:$0x3]
        %v294 = vld [vmem:[#allocation2] sm:$0xff]
        %v295 = vld [vmem:[#allocation2 + $0x8] sm:$0xff]
        %v297 = vunpack.c.l.b16 %v221
        %v298 = vpack.c.b16 %v297, %v297
        %vm299 = vsmask.f32 7424
        %v300 = vshrl.u32 %v232, 16
        %v302 = vshll.u32 %v232, 16
        %v304 = vrot.slane %v302, 1
        %v305 = vor.u32 %v300, %v304
        %v307 = vshll.u32 %v298, 16
        %v309 = vrot.slane %v307, 1
        %v310 = vsel %vm299, %v305, %v309
        %v312 = vsel %vm233, %v310, 0
        %v315 = vand.u32 %v293, %v240
        %317 = vmatprep.subr.bf16.mxu0 0
        %318 = vmatpush1.bf16.msra.mxu0 0
        %319 = vmatprep.subr.bf16.mxu0 0
        %320 = vmatpush1.bf16.msra.mxu0 0
        %321 = vmatprep.subr.bf16.mxu0 0
        %322 = vmatpush1.bf16.msra.mxu0 0
        %323 = vmatprep.subr.bf16.mxu0 0
        %324 = vmatpush1.bf16.msra.mxu0 0
        %325 = vmatprep.subr.bf16.mxu0 0
        %326 = vmatpush1.bf16.msra.mxu0 0
        %327 = vmatprep.subr.bf16.mxu0 0
        %328 = vmatpush1.bf16.msra.mxu0 0
        %329 = vmatprep.subr.bf16.mxu0 0
        %330 = vmatpush1.bf16.msra.mxu0 0
        %331 = vmatprep.subr.bf16.mxu0 0
        %332 = vmatpush1.bf16.msra.mxu0 %v315
        %333 = vmatprep.subr.bf16.mxu0 0
        %334 = vmatpush2.bf16.msra.mxu0 0
        %335 = vmatprep.subr.bf16.mxu0 0
        %336 = vmatpush2.bf16.msra.mxu0 0
        %337 = vmatprep.subr.bf16.mxu0 0
        %338 = vmatpush2.bf16.msra.mxu0 0
        %339 = vmatprep.subr.bf16.mxu0 0
        %340 = vmatpush2.bf16.msra.mxu0 0
        %341 = vmatprep.subr.bf16.mxu0 0
        %342 = vmatpush2.bf16.msra.mxu0 0
        %343 = vmatprep.subr.bf16.mxu0 0
        %344 = vmatpush2.bf16.msra.mxu0 0
        %345 = vmatprep.subr.bf16.mxu0 0
        %346 = vmatpush2.bf16.msra.mxu0 0
        %347 = vmatprep.subr.bf16.mxu0 0
        %348 = vmatpush2.bf16.msra.mxu0 0
        %349 = vmatprep.mubr.bf16.mxu0 0
        %350 = vmatmul.mubr.bf16.gmra.mxu0 %v312
        %v351 = vpop.f32.mrf.mxu0
        %v352 = vadd.f32 0.0, %v351
        %v353 = vpop.f32.mrf.mxu0
        %v354 = vpop.f32.mrf.mxu0
        %v355 = vadd.f32 0.0, %v354
        %v356 = vpop.f32.mrf.mxu0
        %357 = vdwg.mxu0
        %v358 = vadd.f32 %v294, %v352
        %v359 = vadd.f32 %v295, %v355
        %360 = vst.msk [vmem:[#allocation2] sm:$0xff] %vm287, %v358
        %361 = vst.msk [vmem:[#allocation2 + $0x8] sm:$0xff] %vm287, %v359
        %s362 = sadd.s32 %s222, 2
        %s363 = smul.addr %s362, 2
        %s364 = scalar_lea.vmem %s1, %s363
        %v365 = vld [vmem:[%s364] sm:$0x3]
        %v366 = vld [vmem:[#allocation2] sm:$0xff]
        %v367 = vld [vmem:[#allocation2 + $0x8] sm:$0xff]
        %vm368 = vcmask 1046528
        %v369 = vrot.slane %v232, 1
        %v370 = vrot.slane %v298, 1
        %v371 = vsel %vm368, %v369, %v370
        %v373 = vsel %vm233, %v371, 0
        %v376 = vand.u32 %v365, %v240
        %378 = vmatprep.subr.bf16.mxu0 0
        %379 = vmatpush1.bf16.msra.mxu0 0
        %380 = vmatprep.subr.bf16.mxu0 0
        %381 = vmatpush1.bf16.msra.mxu0 0
        %382 = vmatprep.subr.bf16.mxu0 0
        %383 = vmatpush1.bf16.msra.mxu0 0
        %384 = vmatprep.subr.bf16.mxu0 0
        %385 = vmatpush1.bf16.msra.mxu0 0
        %386 = vmatprep.subr.bf16.mxu0 0
        %387 = vmatpush1.bf16.msra.mxu0 0
        %388 = vmatprep.subr.bf16.mxu0 0
        %389 = vmatpush1.bf16.msra.mxu0 0
        %390 = vmatprep.subr.bf16.mxu0 0
        %391 = vmatpush1.bf16.msra.mxu0 0
        %392 = vmatprep.subr.bf16.mxu0 0
        %393 = vmatpush1.bf16.msra.mxu0 %v376
        %394 = vmatprep.subr.bf16.mxu0 0
        %395 = vmatpush2.bf16.msra.mxu0 0
        %396 = vmatprep.subr.bf16.mxu0 0
        %397 = vmatpush2.bf16.msra.mxu0 0
        %398 = vmatprep.subr.bf16.mxu0 0
        %399 = vmatpush2.bf16.msra.mxu0 0
        %400 = vmatprep.subr.bf16.mxu0 0
        %401 = vmatpush2.bf16.msra.mxu0 0
        %402 = vmatprep.subr.bf16.mxu0 0
        %403 = vmatpush2.bf16.msra.mxu0 0
        %404 = vmatprep.subr.bf16.mxu0 0
        %405 = vmatpush2.bf16.msra.mxu0 0
        %406 = vmatprep.subr.bf16.mxu0 0
        %407 = vmatpush2.bf16.msra.mxu0 0
        %408 = vmatprep.subr.bf16.mxu0 0
        %409 = vmatpush2.bf16.msra.mxu0 0
        %410 = vmatprep.mubr.bf16.mxu0 0
        %411 = vmatmul.mubr.bf16.gmra.mxu0 %v373
        %v412 = vpop.f32.mrf.mxu0
        %v413 = vadd.f32 0.0, %v412
        %v414 = vpop.f32.mrf.mxu0
        %v415 = vpop.f32.mrf.mxu0
        %v416 = vadd.f32 0.0, %v415
        %v417 = vpop.f32.mrf.mxu0
        %418 = vdwg.mxu0
        %v419 = vadd.f32 %v366, %v413
        %v420 = vadd.f32 %v367, %v416
        %421 = vst.msk [vmem:[#allocation2] sm:$0xff] %vm287, %v419
        %422 = vst.msk [vmem:[#allocation2 + $0x8] sm:$0xff] %vm287, %v420
        %s423 = sadd.s32 %s222, 3
        %s424 = smul.addr %s423, 2
        %s425 = scalar_lea.vmem %s1, %s424
        %v426 = vld [vmem:[%s425] sm:$0x3]
        %v427 = vld [vmem:[#allocation2] sm:$0xff]
        %v428 = vld [vmem:[#allocation2 + $0x8] sm:$0xff]
        %vm429 = vsmask.f32 6400
        %v430 = vrot.slane %v300, 1
        %v431 = vrot.slane %v302, 2
        %v432 = vor.u32 %v430, %v431
        %v433 = vshrl.u32 %v298, 16
        %v435 = vrot.slane %v433, 1
        %v436 = vrot.slane %v307, 2
        %v437 = vor.u32 %v435, %v436
        %v438 = vsel %vm429, %v432, %v437
        %v440 = vsel %vm233, %v438, 0
        %v443 = vand.u32 %v426, %v240
        %445 = vmatprep.subr.bf16.mxu0 0
        %446 = vmatpush1.bf16.msra.mxu0 0
        %447 = vmatprep.subr.bf16.mxu0 0
        %448 = vmatpush1.bf16.msra.mxu0 0
        %449 = vmatprep.subr.bf16.mxu0 0
        %450 = vmatpush1.bf16.msra.mxu0 0
        %451 = vmatprep.subr.bf16.mxu0 0
        %452 = vmatpush1.bf16.msra.mxu0 0
        %453 = vmatprep.subr.bf16.mxu0 0
        %454 = vmatpush1.bf16.msra.mxu0 0
        %455 = vmatprep.subr.bf16.mxu0 0
        %456 = vmatpush1.bf16.msra.mxu0 0
        %457 = vmatprep.subr.bf16.mxu0 0
        %458 = vmatpush1.bf16.msra.mxu0 0
        %459 = vmatprep.subr.bf16.mxu0 0
        %460 = vmatpush1.bf16.msra.mxu0 %v443
        %461 = vmatprep.subr.bf16.mxu0 0
        %462 = vmatpush2.bf16.msra.mxu0 0
        %463 = vmatprep.subr.bf16.mxu0 0
        %464 = vmatpush2.bf16.msra.mxu0 0
        %465 = vmatprep.subr.bf16.mxu0 0
        %466 = vmatpush2.bf16.msra.mxu0 0
        %467 = vmatprep.subr.bf16.mxu0 0
        %468 = vmatpush2.bf16.msra.mxu0 0
        %469 = vmatprep.subr.bf16.mxu0 0
        %470 = vmatpush2.bf16.msra.mxu0 0
        %471 = vmatprep.subr.bf16.mxu0 0
        %472 = vmatpush2.bf16.msra.mxu0 0
        %473 = vmatprep.subr.bf16.mxu0 0
        %474 = vmatpush2.bf16.msra.mxu0 0
        %475 = vmatprep.subr.bf16.mxu0 0
        %476 = vmatpush2.bf16.msra.mxu0 0
        %477 = vmatprep.mubr.bf16.mxu0 0
        %478 = vmatmul.mubr.bf16.gmra.mxu0 %v440
        %v479 = vpop.f32.mrf.mxu0
        %v480 = vadd.f32 0.0, %v479
        %v481 = vpop.f32.mrf.mxu0
        %v482 = vpop.f32.mrf.mxu0
        %v483 = vadd.f32 0.0, %v482
        %v484 = vpop.f32.mrf.mxu0
        %485 = vdwg.mxu0
        %v486 = vadd.f32 %v427, %v480
        %v487 = vadd.f32 %v428, %v483
        %488 = vst.msk [vmem:[#allocation2] sm:$0xff] %vm287, %v486
        %489 = vst.msk [vmem:[#allocation2 + $0x8] sm:$0xff] %vm287, %v487
        %s490 = sadd.s32 %s222, 4
        %s491 = smul.addr %s490, 2
        %s492 = scalar_lea.vmem %s1, %s491
        %v493 = vld [vmem:[%s492] sm:$0x3]
        %v494 = vld [vmem:[#allocation2] sm:$0xff]
        %v495 = vld [vmem:[#allocation2 + $0x8] sm:$0xff]
        %vm496 = vcmask 1045504
        %v497 = vrot.slane %v232, 2
        %v498 = vrot.slane %v298, 2
        %v499 = vsel %vm496, %v497, %v498
        %v501 = vsel %vm233, %v499, 0
        %v504 = vand.u32 %v493, %v240
        %506 = vmatprep.subr.bf16.mxu0 0
        %507 = vmatpush1.bf16.msra.mxu0 0
        %508 = vmatprep.subr.bf16.mxu0 0
        %509 = vmatpush1.bf16.msra.mxu0 0
        %510 = vmatprep.subr.bf16.mxu0 0
        %511 = vmatpush1.bf16.msra.mxu0 0
        %512 = vmatprep.subr.bf16.mxu0 0
        %513 = vmatpush1.bf16.msra.mxu0 0
        %514 = vmatprep.subr.bf16.mxu0 0
        %515 = vmatpush1.bf16.msra.mxu0 0
        %516 = vmatprep.subr.bf16.mxu0 0
        %517 = vmatpush1.bf16.msra.mxu0 0
        %518 = vmatprep.subr.bf16.mxu0 0
        %519 = vmatpush1.bf16.msra.mxu0 0
        %520 = vmatprep.subr.bf16.mxu0 0
        %521 = vmatpush1.bf16.msra.mxu0 %v504
        %522 = vmatprep.subr.bf16.mxu0 0
        %523 = vmatpush2.bf16.msra.mxu0 0
        %524 = vmatprep.subr.bf16.mxu0 0
        %525 = vmatpush2.bf16.msra.mxu0 0
        %526 = vmatprep.subr.bf16.mxu0 0
        %527 = vmatpush2.bf16.msra.mxu0 0
        %528 = vmatprep.subr.bf16.mxu0 0
        %529 = vmatpush2.bf16.msra.mxu0 0
        %530 = vmatprep.subr.bf16.mxu0 0
        %531 = vmatpush2.bf16.msra.mxu0 0
        %532 = vmatprep.subr.bf16.mxu0 0
        %533 = vmatpush2.bf16.msra.mxu0 0
        %534 = vmatprep.subr.bf16.mxu0 0
        %535 = vmatpush2.bf16.msra.mxu0 0
        %536 = vmatprep.subr.bf16.mxu0 0
        %537 = vmatpush2.bf16.msra.mxu0 0
        %538 = vmatprep.mubr.bf16.mxu0 0
        %539 = vmatmul.mubr.bf16.gmra.mxu0 %v501
        %v540 = vpop.f32.mrf.mxu0
        %v541 = vadd.f32 0.0, %v540
        %v542 = vpop.f32.mrf.mxu0
        %v543 = vpop.f32.mrf.mxu0
        %v544 = vadd.f32 0.0, %v543
        %v545 = vpop.f32.mrf.mxu0
        %546 = vdwg.mxu0
        %v547 = vadd.f32 %v494, %v541
        %v548 = vadd.f32 %v495, %v544
        %549 = vst.msk [vmem:[#allocation2] sm:$0xff] %vm287, %v547
        %550 = vst.msk [vmem:[#allocation2 + $0x8] sm:$0xff] %vm287, %v548
        %p551 = scmp.eq.s32.totalorder %s24, 4
        // Predicated region
        $region37: #{tpu_custom_call.1} parent=31 // pred_check
          %p552 = pneg %p551
        $region38: #{tpu_custom_call.1} parent=31 // pred_check_branch
          %554 = sbr.rel (%p552) target = $region40
        $region39: #{tpu_custom_call.1} parent=31 // pred_region
          %v555 = vld [vmem:[#allocation2] sm:$0xff]
          %v556 = vld [vmem:[#allocation2 + $0x8] sm:$0xff]
          %v557 = vld [vmem:[%s2] sm:$0x1]
          %v559 = vlaneseq
          %v560 = vshrl.u32 %v559, 7
          %v561 = vsub.s32 0, %v560
          %v562 = vrot.slane %v557, %v561
          %v564 = vadd.f32 %v555, %v562
          %v565 = vadd.f32 %v556, %v562
          %vm566 = vcmp.ge.f32.partialorder %v564, 0.0
          %vm567 = vcmp.ge.f32.partialorder %v565, 0.0
          %v568 = vmul.f32 %v564, 0.1
          %v569 = vmul.f32 %v565, 0.1
          %v570 = vsel %vm566, %v564, %v568
          %v571 = vsel %vm567, %v565, %v569
          %v572 = vpack.c.bf16 %v571, %v570
          %v574 = vunpack.c.l.b16 %v572
          %v575 = vunpack.c.h.b16 %v572
          %v576 = vpack.c.b16 %v574, %v574
          %v577 = vpack.c.b16 %v575, %v575
          %vm580 = vcmask 257024
          %581 = vst.msk [vmem:[%s199] sm:$0xf] %vm580, %v576
          %582 = vst.msk [vmem:[%s199 + $0x4] sm:$0xf] %vm580, %v577
        $region40: #{tpu_custom_call.1} parent=31 // pred_fallthru
          _
        %s583 = sand.u32 %s118, 1
        %s584 = scalar_lea.sflag [#allocation4], %s583
        %s585 = sand.u32 %s118, 1
        %s586 = smul.addr %s585, 8
        %s587 = scalar_lea.vmem [#allocation3], %s586
        // Predicated region
        $region41: #{tpu_custom_call.1} parent=31 // pred_check
          %p588 = pneg %p128
        $region42: #{tpu_custom_call.1} parent=31 // pred_check_branch
          %590 = sbr.rel (%p588) target = $region44
        $region43: #{tpu_custom_call.1} parent=31 // pred_region
          %s592 = ssub.s32 128, 128
          %593 = vsyncadd %s584, %s592
          %s594 = smul.addr %s23, 2
          %s595 = smul.addr %s22, 32
          %s596 = sadd.s32 %s594, %s595
          %s597 = smul.addr %s596, 64
          %s598 = scalar_lea.hbm %s3, %s597
          %s599 = sshll.u32 %s587, 4
          %s600 = int_to_ptr.vmem [resolvable:$true] %s599
          %605 = dma.vmem_to_hbm [thread:$0]  %s600, 128, %s598, %s584, 64, 64, 4
        $region44: #{tpu_custom_call.1} parent=31 // pred_fallthru
          _
      $region32: #{tpu_custom_call.1} parent=5 // pred_fallthru
        _
      %p606 = scmp.le.s32.totalorder 2, %s12
      // Predicated region
      $region45: #{tpu_custom_call.1} parent=5 // pred_check
        %p607 = pneg %p606
      $region46: #{tpu_custom_call.1} parent=5 // pred_check_branch
        %609 = sbr.rel (%p607) target = $region48
      $region47: #{tpu_custom_call.1} parent=5 // pred_region
        %s610 = ssub.s32 %s12, 2
        // Predicated region
        $region49: #{tpu_custom_call.1} parent=47 // pred_check
          %p611 = pneg %p134
        $region50: #{tpu_custom_call.1} parent=47 // pred_check_branch
          %613 = sbr.rel (%p611) target = $region52
        $region51: #{tpu_custom_call.1} parent=47 // pred_region
          %s614 = sand.u32 %s119, 1
          %s615 = scalar_lea.sflag [#allocation4], %s614
          %s616 = sand.u32 %s119, 1
          %s617 = smul.addr %s616, 8
          %s618 = scalar_lea.vmem [#allocation3], %s617
          %619 = dma.done %s615, 128
        $region52: #{tpu_custom_call.1} parent=47 // pred_fallthru
          _
      $region48: #{tpu_custom_call.1} parent=5 // pred_fallthru
        _
    $region6: #{tpu_custom_call.1} parent=1 // loop_footer
      %s16 = sadd.s32 1, %s12
    $region7: #{tpu_custom_call.1} parent=1 // loop_footer_branch
      %11 = sbr.rel target = $region3
    $region8: #{tpu_custom_call.1} parent=1 // loop_exit
      _
    %620 = vsyncpa [#allocation4], 1
    %s621 = scalar_lea.sflag [#allocation4], 1
    %622 = vsyncpa %s621, 1

</llo_original>
